<compile_context>
chip_gen: v5e
topology: v5e:2x2
jax: 0.10.0
libtpu: 0.0.40
codegen_flags: <defaults>
</compile_context>

<pallas_src>
import numpy as np
import jax
import jax.numpy as jnp
from jax.experimental import pallas as pl
from jax.experimental.pallas import tpu as pltpu


def _outconv_kernel(x_ref, w_ref, b_ref, o_ref):
    # x_ref: (C, ts)   w_ref: (OC, C)   b_ref: (OC, 1)   o_ref: (OC, ts)
    acc = jnp.dot(w_ref[...], x_ref[...], preferred_element_type=jnp.float32)
    acc = acc + b_ref[...]                      # broadcast over the lane axis
    o_ref[...] = jnp.tanh(acc).astype(o_ref.dtype)


def _pick_spatial_tile(hw, max_tile=4096):
    """Largest lane-dense (multiple-of-128) divisor of hw, capped by max_tile.
    Falls back to the full extent when hw is not a multiple of 128 (full-dim
    blocks are always legal)."""
    if hw % 128 != 0:
        return hw
    ts = min(hw, max_tile)
    ts = (ts // 128) * 128
    while hw % ts != 0:
        ts -= 128
    return ts


def outconv_forward(x, weight, bias, *, max_spatial_tile=4096):
    """OutConv.forward: NCHW -> (N, OC, H, W), fused 1x1 conv + bias + tanh."""
    n, c, h, w = x.shape
    oc = weight.shape[0]
    hw = h * w

    x2 = x.reshape(n, c, hw)                          # free, row-major reshape
    # Keep interpolation-free conv weights/bias in f32 regardless of x dtype
    # (MXU accumulates in f32 anyway; avoids bf16-quantized weights).
    w2 = weight.reshape(oc, c).astype(jnp.float32)
    b2 = bias.reshape(oc, 1).astype(jnp.float32)

    ts = _pick_spatial_tile(hw, max_spatial_tile)
    n_spatial = hw // ts

    itemsize = jnp.dtype(x.dtype).itemsize
    cost = pl.CostEstimate(
        flops=2 * n * oc * c * hw,
        transcendentals=n * oc * hw,
        bytes_accessed=(n * c * hw + n * oc * hw) * itemsize
        + w2.size * 4 + b2.size * 4,
    )

    out = pl.pallas_call(
        _outconv_kernel,
        out_shape=jax.ShapeDtypeStruct((n, oc, hw), x.dtype),
        grid_spec=pltpu.PrefetchScalarGridSpec(
            num_scalar_prefetch=0,
            grid=(n, n_spatial),
            in_specs=[
                # activations: squeeze batch, full channel dim, lane-dense tile
                pl.BlockSpec((None, c, ts), lambda i, s: (i, 0, s)),
                # weights / bias: tiny, resident in VMEM across all grid steps
                pl.BlockSpec((oc, c), lambda i, s: (0, 0)),
                pl.BlockSpec((oc, 1), lambda i, s: (0, 0)),
            ],
            out_specs=pl.BlockSpec((None, oc, ts), lambda i, s: (i, 0, s)),
        ),
        compiler_params=pltpu.CompilerParams(
            dimension_semantics=("parallel", "parallel")),
        cost_estimate=cost,
    )(x2, w2, b2)

    return out.reshape(n, oc, h, w)


def _numpy_reference(x, weight, bias):
    """Pure numpy reference: tanh(conv1x1(x) + b) on NCHW."""
    oc = weight.shape[0]
    w2 = weight.reshape(oc, -1)
    y = np.einsum("nchw,oc->nohw", x, w2) + bias[None, :, None, None]
    return np.tanh(y)


if __name__ == "__main__":
    key = jax.random.PRNGKey(0)
    kx, kw, kb = jax.random.split(key, 3)

    in_channels, out_channels = 4, 2
    x = jax.random.normal(kx, (2, in_channels, 16, 16), dtype=jnp.float32)
    weight = 0.5 * jax.random.normal(
        kw, (out_channels, in_channels, 1, 1), dtype=jnp.float32)
    bias = 0.1 * jax.random.normal(kb, (out_channels,), dtype=jnp.float32)

    y = outconv_forward(x, weight, bias)
    y = jax.block_until_ready(y)

    y_ref = _numpy_reference(np.asarray(x), np.asarray(weight), np.asarray(bias))
    assert y.shape == (2, out_channels, 16, 16), y.shape
    np.testing.assert_allclose(np.asarray(y), y_ref, rtol=1e-4, atol=1e-4)

    print("KERNEL_OK")
</pallas_src>

<mosaic_0001>
module attributes {stable_mosaic.version = 11 : i64} {
  func.func @_outconv_kernel(%arg0: i32, %arg1: i32, %arg2: memref<1x4x256xf32, #tpu.memory_space<vmem>>, %arg3: memref<2x4xf32, #tpu.memory_space<vmem>>, %arg4: memref<2x1xf32, #tpu.memory_space<vmem>>, %arg5: memref<1x2x256xf32, #tpu.memory_space<vmem>>) attributes {dimension_semantics = [#tpu.dimension_semantics<parallel>, #tpu.dimension_semantics<parallel>], iteration_bounds = array<i64: 2, 1>, scalar_prefetch = 0 : i64, scratch_operands = 0 : i64, tpu.core_type = #tpu.core_type<tc>, window_params = [{transform_indices = @transform_0, window_bounds = array<i64: 1, 4, 256>}, {pipeline_mode = #tpu.pipeline_mode<synchronous>, transform_indices = @transform_1, window_bounds = array<i64: 2, 4>}, {pipeline_mode = #tpu.pipeline_mode<synchronous>, transform_indices = @transform_2, window_bounds = array<i64: 2, 1>}, {transform_indices = @transform_3, window_bounds = array<i64: 1, 2, 256>}]} {
    %c0 = arith.constant 0 : index
    %c0_0 = arith.constant 0 : index
    %0 = vector.load %arg3[%c0, %c0_0] : memref<2x4xf32, #tpu.memory_space<vmem>>, vector<2x4xf32>
    %c0_1 = arith.constant 0 : index
    %c0_2 = arith.constant 0 : index
    %c0_3 = arith.constant 0 : index
    %1 = vector.load %arg2[%c0_1, %c0_2, %c0_3] : memref<1x4x256xf32, #tpu.memory_space<vmem>>, vector<1x4x256xf32>
    %2 = vector.shape_cast %1 : vector<1x4x256xf32> to vector<4x256xf32>
    %cst = arith.constant dense<0.000000e+00> : vector<2x256xf32>
    %3 = tpu.matmul %0, %2, %cst {dimension_numbers = #tpu.dot_dimension_numbers<[1], [0], [0], [1], [0, 0, 1, 1], [], []>} : vector<2x4xf32>, vector<4x256xf32>, vector<2x256xf32> -> vector<2x256xf32>
    %c0_4 = arith.constant 0 : index
    %c0_5 = arith.constant 0 : index
    %4 = vector.load %arg4[%c0_4, %c0_5] : memref<2x1xf32, #tpu.memory_space<vmem>>, vector<2x1xf32>
    %5 = vector.broadcast %4 : vector<2x1xf32> to vector<2x256xf32>
    %6 = arith.addf %3, %5 : vector<2x256xf32>
    %7 = math.tanh %6 : vector<2x256xf32>
    %c0_6 = arith.constant 0 : index
    %c0_7 = arith.constant 0 : index
    %c0_8 = arith.constant 0 : index
    %8 = vector.load %arg5[%c0_6, %c0_7, %c0_8] : memref<1x2x256xf32, #tpu.memory_space<vmem>>, vector<1x2x256xf32>
    %9 = vector.shape_cast %8 : vector<1x2x256xf32> to vector<2x256xf32>
    %10 = vector.shape_cast %7 : vector<2x256xf32> to vector<1x2x256xf32>
    tpu.vector_store %arg5[%c0_6, %c0_7, %c0_8], %10 {strides = array<i32>} : memref<1x2x256xf32, #tpu.memory_space<vmem>>, vector<1x2x256xf32>,
    return
  }
  func.func @transform_0(%arg0: i32, %arg1: i32) -> (i32, i32, i32) {
    %c0_i32 = arith.constant 0 : i32
    %c0_i32_0 = arith.constant 0 : i32
    return %arg0, %c0_i32, %arg1 : i32, i32, i32
  }
  func.func @transform_1(%arg0: i32, %arg1: i32) -> (i32, i32) {
    %c0_i32 = arith.constant 0 : i32
    %c0_i32_0 = arith.constant 0 : i32
    %c0_i32_1 = arith.constant 0 : i32
    return %c0_i32, %c0_i32_0 : i32, i32
  }
  func.func @transform_2(%arg0: i32, %arg1: i32) -> (i32, i32) {
    %c0_i32 = arith.constant 0 : i32
    %c0_i32_0 = arith.constant 0 : i32
    %c0_i32_1 = arith.constant 0 : i32
    return %c0_i32, %c0_i32_0 : i32, i32
  }
  func.func @transform_3(%arg0: i32, %arg1: i32) -> (i32, i32, i32) {
    %c0_i32 = arith.constant 0 : i32
    %c0_i32_0 = arith.constant 0 : i32
    return %arg0, %c0_i32, %arg1 : i32, i32, i32
  }
}

</mosaic_0001>

<llo_original>
// kernel: tpu_custom_call.1
$region0: #{tpu_custom_call.1}
  #allocation0 [shape = 'u32[]', space=smem, size = 0x4, offset = 0x4, fixed_abs, tag = 'smem constant byte address 0x4 - core index']
  #allocation1 [shape = 'u32[72,128]{1,0:T(1,128)}', space=vmem, size = 0x9000, scoped, tag = 'internal scratch']
  %s0 = inlined_call_operand.hbm [shape: f32[2,4,256], index: 0, kind: input, shape index: {}]
  %s1 = inlined_call_operand.vmem [shape: f32[2,4], index: 1, kind: input, shape index: {}]
  %s2 = inlined_call_operand.vmem [shape: f32[2,1], index: 2, kind: input, shape index: {}]
  %s3 = inlined_call_operand.hbm [shape: f32[2,2,256], index: 3, kind: output, shape index: {}]
  %s4 = sld [smem:[#allocation0]]
  $region49: #{tpu_custom_call.1} parent=0
    _
  %s6 = ssub.s32 1, %s4
  %s7 = scalar_select 0, %s6, %s4
  $region1: #{tpu_custom_call.1} parent=0
    #allocation2 [shape = 'u8[8192]{0}', space=vmem, size = 0x2000, scoped, tag = 'input window, operand 0']
    #allocation3 [shape = 's32[2]{0}', space=sflag, size = 0x8, scoped, tag = 'scoped memory for tpu_custom_call.1']
    #allocation4 [shape = 's32[2]{0}', space=sflag, size = 0x8, scoped, tag = 'scoped memory for tpu_custom_call.1']
    #allocation5 [shape = 'u8[4096]{0}', space=vmem, size = 0x1000, scoped, tag = 'output window, operand 0']
    %8 = vsyncpa [#allocation3], 0
    %s9 = scalar_lea.sflag [#allocation3], 1
    %10 = vsyncpa %s9, 0
    %11 = vsyncpa [#allocation4], 0
    %s12 = scalar_lea.sflag [#allocation4], 1
    %13 = vsyncpa %s12, 0
    loop: start=0, step=1, limit=4
    $region2: #{tpu_custom_call.1} parent=1 // loop_pre_header
      _
    $region3: #{tpu_custom_call.1} parent=1 // loop_header
      %s15 = sphi 0, %s19
      %p16 = scmp.ge.s32.totalorder %s15, 4
      %s22 = sphi 0, %s34
      %s23 = sphi 0, %s30
      %s24 = sphi 0, %s22
      %s25 = sphi 0, %s23
      %s26 = sphi 0, %s24
      %s27 = sphi 0, %s25
      %s39 = sphi 0, %s41
      %s42 = sphi 0, %s39
      %s43 = sphi 0, %s42
      %s59 = sphi 0, %s43
      %s63 = sphi 0, %s63
      %s65 = sphi 0, %s63
      %s66 = sphi 0, %s65
      %s80 = sphi 0, %s66
      %s84 = sphi 0, %s84
      %s86 = sphi 0, %s84
      %s87 = sphi 0, %s86
      %s101 = sphi 0, %s87
      %s109 = sphi 0, %s111
      %s112 = sphi 0, %s109
      %s113 = sphi 0, %s112
      %s129 = sphi 0, %s113
    $region4: #{tpu_custom_call.1} parent=1 // loop_header_branch
      %18 = sbr.rel (%p16) target = $region8
    $region5: #{tpu_custom_call.1} parent=1 // loop_body
      %s20 = ssub.s32 %s15, 1
      %s21 = ssub.s32 %s15, 2
      %s28 = sadd.s32 1, %s23
      %p29 = scmp.ge.s32.totalorder %s28, 1
      %s30 = scalar_select %p29, 0, %s28
      %s31 = sadd.s32 1, %s22
      %s32 = scalar_select %p29, %s31, %s22
      %p33 = scmp.ge.s32.totalorder %s32, 2
      %s34 = scalar_select %p33, 0, %s32
      %s35 = ssub.s32 %s22, %s34
      %s36 = ssub.s32 %s23, %s30
      %s37 = sor.u32 %s35, %s36
      %p38 = scmp.eq.s32.totalorder %s37, 0
      %s40 = sadd.s32 %s39, 1
      %s41 = scalar_select %p38, %s39, %s40
      %p44 = pneg %p38
      %p45 = scmp.eq.s32.totalorder %s15, 1
      %p46 = por %p44, %p45
      %p47 = scmp.ne.s32.totalorder %s39, %s42
      %p48 = scmp.eq.s32.totalorder %s15, 0
      %p49 = por %p47, %p48
      %p50 = scmp.ne.s32.totalorder %s39, %s42
      %p51 = scmp.eq.s32.totalorder %s20, 1
      %p52 = por %p50, %p51
      %p53 = scmp.ne.s32.totalorder %s42, %s43
      %p54 = scmp.eq.s32.totalorder %s20, 0
      %p55 = por %p53, %p54
      %p56 = scmp.ne.s32.totalorder %s42, %s43
      %p57 = scmp.eq.s32.totalorder %s21, 1
      %p58 = por %p56, %p57
      %p60 = scmp.ne.s32.totalorder %s43, %s59
      %p61 = scmp.eq.s32.totalorder %s21, 0
      %p62 = por %p60, %p61
      %s64 = sadd.s32 %s63, 1
      %p67 = scmp.eq.s32.totalorder %s15, 1
      %p68 = scmp.ne.s32.totalorder %s63, %s65
      %p69 = scmp.eq.s32.totalorder %s15, 0
      %p70 = por %p68, %p69
      %p71 = scmp.ne.s32.totalorder %s63, %s65
      %p72 = scmp.eq.s32.totalorder %s20, 1
      %p73 = por %p71, %p72
      %p74 = scmp.ne.s32.totalorder %s65, %s66
      %p75 = scmp.eq.s32.totalorder %s20, 0
      %p76 = por %p74, %p75
      %p77 = scmp.ne.s32.totalorder %s65, %s66
      %p78 = scmp.eq.s32.totalorder %s21, 1
      %p79 = por %p77, %p78
      %p81 = scmp.ne.s32.totalorder %s66, %s80
      %p82 = scmp.eq.s32.totalorder %s21, 0
      %p83 = por %p81, %p82
      %s85 = sadd.s32 %s84, 1
      %p88 = scmp.eq.s32.totalorder %s15, 1
      %p89 = scmp.ne.s32.totalorder %s84, %s86
      %p90 = scmp.eq.s32.totalorder %s15, 0
      %p91 = por %p89, %p90
      %p92 = scmp.ne.s32.totalorder %s84, %s86
      %p93 = scmp.eq.s32.totalorder %s20, 1
      %p94 = por %p92, %p93
      %p95 = scmp.ne.s32.totalorder %s86, %s87
      %p96 = scmp.eq.s32.totalorder %s20, 0
      %p97 = por %p95, %p96
      %p98 = scmp.ne.s32.totalorder %s86, %s87
      %p99 = scmp.eq.s32.totalorder %s21, 1
      %p100 = por %p98, %p99
      %p102 = scmp.ne.s32.totalorder %s87, %s101
      %p103 = scmp.eq.s32.totalorder %s21, 0
      %p104 = por %p102, %p103
      %s105 = ssub.s32 %s22, %s34
      %s106 = ssub.s32 %s23, %s30
      %s107 = sor.u32 %s105, %s106
      %p108 = scmp.eq.s32.totalorder %s107, 0
      %s110 = sadd.s32 %s109, 1
      %s111 = scalar_select %p108, %s109, %s110
      %p114 = pneg %p108
      %p115 = scmp.eq.s32.totalorder %s15, 1
      %p116 = por %p114, %p115
      %p117 = scmp.ne.s32.totalorder %s109, %s112
      %p118 = scmp.eq.s32.totalorder %s15, 0
      %p119 = por %p117, %p118
      %p120 = scmp.ne.s32.totalorder %s109, %s112
      %p121 = scmp.eq.s32.totalorder %s20, 1
      %p122 = por %p120, %p121
      %p123 = scmp.ne.s32.totalorder %s112, %s113
      %p124 = scmp.eq.s32.totalorder %s20, 0
      %p125 = por %p123, %p124
      %p126 = scmp.ne.s32.totalorder %s112, %s113
      %p127 = scmp.eq.s32.totalorder %s21, 1
      %p128 = por %p126, %p127
      %p130 = scmp.ne.s32.totalorder %s113, %s129
      %p131 = scmp.eq.s32.totalorder %s21, 0
      %p132 = por %p130, %p131
      %p133 = scmp.le.s32.totalorder 1, %s15
      %p134 = scmp.lt.s32.totalorder %s15, 3
      %p135 = pnand %p133, %p134
      %p136 = pneg %p135
      // Predicated region
      $region9: #{tpu_custom_call.1} parent=5 // pred_check
        _
      $region10: #{tpu_custom_call.1} parent=5 // pred_check_branch
        %138 = sbr.rel (%p135) target = $region12
      $region11: #{tpu_custom_call.1} parent=5 // pred_region
        %s139 = ssub.s32 %s15, 1
        // Predicated region
        $region13: #{tpu_custom_call.1} parent=11 // pred_check
          %p140 = pneg %p76
        $region14: #{tpu_custom_call.1} parent=11 // pred_check_branch
          %142 = sbr.rel (%p140) target = $region16
        $region15: #{tpu_custom_call.1} parent=11 // pred_region
          _
        $region16: #{tpu_custom_call.1} parent=11 // pred_fallthru
          _
        // Predicated region
        $region17: #{tpu_custom_call.1} parent=11 // pred_check
          %p143 = pneg %p97
        $region18: #{tpu_custom_call.1} parent=11 // pred_check_branch
          %145 = sbr.rel (%p143) target = $region20
        $region19: #{tpu_custom_call.1} parent=11 // pred_region
          _
        $region20: #{tpu_custom_call.1} parent=11 // pred_fallthru
          _
      $region12: #{tpu_custom_call.1} parent=5 // pred_fallthru
        _
      %p146 = scmp.lt.s32.totalorder %s15, 2
      // Predicated region
      $region21: #{tpu_custom_call.1} parent=5 // pred_check
        %p147 = pneg %p146
      $region22: #{tpu_custom_call.1} parent=5 // pred_check_branch
        %149 = sbr.rel (%p147) target = $region24
      $region23: #{tpu_custom_call.1} parent=5 // pred_region
        // Predicated region
        $region25: #{tpu_custom_call.1} parent=23 // pred_check
          %p150 = pneg %p49
        $region26: #{tpu_custom_call.1} parent=23 // pred_check_branch
          %152 = sbr.rel (%p150) target = $region28
        $region27: #{tpu_custom_call.1} parent=23 // pred_region
          %s153 = sand.u32 %s39, 1
          %s154 = scalar_lea.sflag [#allocation3], %s153
          %s155 = sand.u32 %s39, 1
          %s156 = smul.addr %s155, 8
          %s157 = scalar_lea.vmem [#allocation2], %s156
          %s158 = smul.u32 2, %s23
          %160 = vsyncadd %s154, 0
          %s161 = smul.addr %s22, 2
          %s162 = sadd.s32 %s158, %s161
          %s163 = smul.addr %s162, 4
          %s164 = scalar_lea.hbm %s0, %s163
          %s166 = sshll.u32 %s164, 4
          %s167 = int_to_ptr.hbm [resolvable:$true] %s166
          %s168 = sshll.u32 %s157, 4
          %s169 = int_to_ptr.vmem [resolvable:$true] %s168
          %171 = dma.hbm_to_vmem [thread:$0]  %s167, 128, %s169, %s154
        $region28: #{tpu_custom_call.1} parent=23 // pred_fallthru
          _
      $region24: #{tpu_custom_call.1} parent=5 // pred_fallthru
        _
      %p172 = scmp.le.s32.totalorder 1, %s15
      %p173 = scmp.lt.s32.totalorder %s15, 3
      %p174 = pnand %p172, %p173
      %p175 = pneg %p174
      // Predicated region
      $region29: #{tpu_custom_call.1} parent=5 // pred_check
        _
      $region30: #{tpu_custom_call.1} parent=5 // pred_check_branch
        %177 = sbr.rel (%p174) target = $region32
      $region31: #{tpu_custom_call.1} parent=5 // pred_region
        %s178 = ssub.s32 %s15, 1
        %s179 = sand.u32 %s42, 1
        %s180 = scalar_lea.sflag [#allocation3], %s179
        %s181 = sand.u32 %s42, 1
        %s182 = smul.addr %s181, 8
        %s183 = scalar_lea.vmem [#allocation2], %s182
        // Predicated region
        $region33: #{tpu_custom_call.1} parent=31 // pred_check
          %p184 = pneg %p55
        $region34: #{tpu_custom_call.1} parent=31 // pred_check_branch
          %186 = sbr.rel (%p184) target = $region36
        $region35: #{tpu_custom_call.1} parent=31 // pred_region
          %188 = dma.done %s180, 128
        $region36: #{tpu_custom_call.1} parent=31 // pred_fallthru
          _
        %s189 = sand.u32 %s42, 1
        %s190 = scalar_lea.sflag [#allocation3], %s189
        %s191 = sand.u32 %s42, 1
        %s192 = smul.addr %s191, 8
        %s193 = scalar_lea.vmem [#allocation2], %s192
        %p194 = pneg %p55
        %p195 = pneg %p52
        %p196 = pneg %p76
        %p197 = pneg %p73
        %p198 = pneg %p97
        %p199 = pneg %p94
        %p200 = pneg %p125
        %p201 = pneg %p122
        %s202 = sand.u32 %s112, 1
        %s203 = scalar_lea.sflag [#allocation4], %s202
        %s204 = sand.u32 %s112, 1
        %s205 = smul.addr %s204, 4
        %s206 = scalar_lea.vmem [#allocation5], %s205
        %s207 = smul.u32 2, %s25
        %s208 = smul.u32 2, %s25
        %v209 = vld [vmem:[%s1] sm:$0x3]
        %v210 = vld [vmem:[%s183] sm:$0xff]
        %v211 = vld [vmem:[%s2] sm:$0x3]
        %213 = vset.pattern.permute.xlu0 0
        %214 = vperm.xlu0 %213, %v211
        %v215 = vpop.permute.xlu0 %214
        %218 = vst [vmem:[#allocation1] ss:$2 sm:$0xff] %v210
        %v219 = vld.sshfl [vmem:[#allocation1] sm:$0xff pattern:$0x75316420]
        %v220 = vld.sshfl [vmem:[#allocation1 + $0x8] sm:$0xff pattern:$0x75316420]
        %vm221 = vcmask 31744
        %v223 = vsel %vm221, %v209, 0
        %vm225 = vcmask 1043456
        %v226 = vsel %vm225, %v219, 0
        %v228 = vsel %vm225, %v220, 0
        %230 = vmatpush.msra.mxu0 0.0
        %231 = vmatpush.msra.mxu0 0.0
        %232 = vmatpush.msra.mxu0 0.0
        %233 = vmatpush.msra.mxu0 0.0
        %234 = vmatpush.msra.mxu0 0.0
        %235 = vmatpush.msra.mxu0 0.0
        %236 = vmatpush.msra.mxu0 0.0
        %237 = vmatpush.msra.mxu0 0.0
        %238 = vmatpush.msra.mxu0 0.0
        %239 = vmatpush.msra.mxu0 0.0
        %240 = vmatpush.msra.mxu0 0.0
        %241 = vmatpush.msra.mxu0 0.0
        %242 = vmatpush.msra.mxu0 0.0
        %243 = vmatpush.msra.mxu0 0.0
        %244 = vmatpush.msra.mxu0 0.0
        %245 = vmatpush.msra.mxu0 %v226
        %246 = vmatmul.f32.gmra.mxu0 %v223
        %v247 = vpop.f32.mrf.mxu0
        %v248 = vadd.f32 %v215, %v247
        %249 = vdwg.mxu0
        %250 = vmatpush.msra.mxu0 0.0
        %251 = vmatpush.msra.mxu0 0.0
        %252 = vmatpush.msra.mxu0 0.0
        %253 = vmatpush.msra.mxu0 0.0
        %254 = vmatpush.msra.mxu0 0.0
        %255 = vmatpush.msra.mxu0 0.0
        %256 = vmatpush.msra.mxu0 0.0
        %257 = vmatpush.msra.mxu0 0.0
        %258 = vmatpush.msra.mxu0 0.0
        %259 = vmatpush.msra.mxu0 0.0
        %260 = vmatpush.msra.mxu0 0.0
        %261 = vmatpush.msra.mxu0 0.0
        %262 = vmatpush.msra.mxu0 0.0
        %263 = vmatpush.msra.mxu0 0.0
        %264 = vmatpush.msra.mxu0 0.0
        %265 = vmatpush.msra.mxu0 %v228
        %266 = vmatmul.f32.gmra.mxu0 %v223
        %v267 = vpop.f32.mrf.mxu0
        %v268 = vadd.f32 %v215, %v267
        %269 = vdwg.mxu0
        %v270 = vtanh.pop %v248
        %v271 = vtanh.pop %v268
        %v274 = vrot.slane %v271, 6
        %vm275 = vcmask 1041408
        %v276 = vsel %vm275, %v270, %v274
        %278 = vst [vmem:[%s206] sm:$0xf] %v276
        %s279 = sand.u32 %s112, 1
        %s280 = scalar_lea.sflag [#allocation4], %s279
        %s281 = sand.u32 %s112, 1
        %s282 = smul.addr %s281, 4
        %s283 = scalar_lea.vmem [#allocation5], %s282
        // Predicated region
        $region37: #{tpu_custom_call.1} parent=31 // pred_check
          %p284 = pneg %p122
        $region38: #{tpu_custom_call.1} parent=31 // pred_check_branch
          %286 = sbr.rel (%p284) target = $region40
        $region39: #{tpu_custom_call.1} parent=31 // pred_region
          %s287 = smul.u32 2, %s25
          %289 = vsyncadd %s280, 0
          %s290 = smul.addr %s24, 2
          %s291 = sadd.s32 %s287, %s290
          %s292 = smul.addr %s291, 2
          %s293 = scalar_lea.hbm %s3, %s292
          %s295 = sshll.u32 %s283, 4
          %s296 = int_to_ptr.vmem [resolvable:$true] %s295
          %s297 = sshll.u32 %s293, 4
          %s298 = int_to_ptr.hbm [resolvable:$true] %s297
          %300 = dma.vmem_to_hbm [thread:$0]  %s296, 64, %s298, %s280
        $region40: #{tpu_custom_call.1} parent=31 // pred_fallthru
          _
      $region32: #{tpu_custom_call.1} parent=5 // pred_fallthru
        _
      %p301 = scmp.le.s32.totalorder 2, %s15
      // Predicated region
      $region41: #{tpu_custom_call.1} parent=5 // pred_check
        %p302 = pneg %p301
      $region42: #{tpu_custom_call.1} parent=5 // pred_check_branch
        %304 = sbr.rel (%p302) target = $region44
      $region43: #{tpu_custom_call.1} parent=5 // pred_region
        %s305 = ssub.s32 %s15, 2
        // Predicated region
        $region45: #{tpu_custom_call.1} parent=43 // pred_check
          %p306 = pneg %p128
        $region46: #{tpu_custom_call.1} parent=43 // pred_check_branch
          %308 = sbr.rel (%p306) target = $region48
        $region47: #{tpu_custom_call.1} parent=43 // pred_region
          %s309 = sand.u32 %s113, 1
          %s310 = scalar_lea.sflag [#allocation4], %s309
          %s311 = sand.u32 %s113, 1
          %s312 = smul.addr %s311, 4
          %s313 = scalar_lea.vmem [#allocation5], %s312
          %315 = dma.done %s310, 64
        $region48: #{tpu_custom_call.1} parent=43 // pred_fallthru
          _
      $region44: #{tpu_custom_call.1} parent=5 // pred_fallthru
        _
    $region6: #{tpu_custom_call.1} parent=1 // loop_footer
      %s19 = sadd.s32 1, %s15
    $region7: #{tpu_custom_call.1} parent=1 // loop_footer_branch
      %14 = sbr.rel target = $region3
    $region8: #{tpu_custom_call.1} parent=1 // loop_exit
      _
    %316 = vsyncpa [#allocation3], 1
    %s317 = scalar_lea.sflag [#allocation3], 1
    %318 = vsyncpa %s317, 1
    %319 = vsyncpa [#allocation4], 1
    %s320 = scalar_lea.sflag [#allocation4], 1
    %321 = vsyncpa %s320, 1

</llo_original>
